<compile_context>
chip_gen: v5e
topology: v5e:2x2
jax: 0.10.0
libtpu: 0.0.40
codegen_flags: <defaults>
</compile_context>

<pallas_src>
import jax
import jax.numpy as jnp
from jax.experimental import pallas as pl
from jax.experimental.pallas import tpu as pltpu

LANE = 128
SUBLANE = 8


def _round_up(n, m):
    return ((n + m - 1) // m) * m


def _decoder_kernel(xh_ref, c_ref, w_gates_ref, b_gates_ref,
                    w_lin_ref, b_lin_ref,
                    y_ref, h_out_ref, c_out_ref):
    # xh_ref:      (TB, 2*Hp) f32   -> [x | h], lane-padded
    # c_ref:       (TB, Hp)   f32
    # w_gates_ref: (2*Hp, 4*Hp) bf16, gate blocks (i, f, g, o) lane-aligned
    # b_gates_ref: (1, 4*Hp) f32    (b_ih + b_hh, lane-padded)
    # w_lin_ref:   (Hp, Op)  bf16,  b_lin_ref: (1, Op) f32
    Hp = c_ref.shape[-1]

    xh = xh_ref[...]
    c = c_ref[...]

    # One fused MXU matmul for all four gates (K = 2*Hp), f32 accumulation.
    gates = jnp.dot(xh.astype(jnp.bfloat16), w_gates_ref[...],
                    preferred_element_type=jnp.float32) + b_gates_ref[...]

    # Lane-aligned (multiple-of-128) gate slices -> full-vreg VPU/EUP work.
    i_g = jax.nn.sigmoid(gates[:, 0 * Hp:1 * Hp])
    f_g = jax.nn.sigmoid(gates[:, 1 * Hp:2 * Hp])
    g_g = jnp.tanh(gates[:, 2 * Hp:3 * Hp])
    o_g = jax.nn.sigmoid(gates[:, 3 * Hp:4 * Hp])

    c_new = f_g * c + i_g * g_g
    h_new = o_g * jnp.tanh(c_new)

    # Final projection: y = h_new @ W_lin^T + b_lin (bf16 MXU inputs, f32 acc).
    y = jnp.dot(h_new.astype(jnp.bfloat16), w_lin_ref[...],
                preferred_element_type=jnp.float32) + b_lin_ref[...]

    # Lane-dense, unmasked stores (Op and Hp are multiples of 128).
    y_ref[...] = y
    h_out_ref[...] = h_new
    c_out_ref[...] = c_new


def decoder_forward(x, hidden, cell, params):
    """x: (B, H); hidden, cell: (1, B, H). Returns (y, hidden_new, cell_new)."""
    B, H = x.shape
    O = params["out_dim"]
    Hp = params["w_lin"].shape[0]
    Op = params["w_lin"].shape[1]

    h0 = hidden[0]  # (B, H)
    c0 = cell[0]    # (B, H)

    TB = min(128, _round_up(B, SUBLANE))
    B_pad = _round_up(B, TB)

    # Build lane-padded [x | h] and c (padding is zeros; padded columns are
    # mathematically inert because the padded weight rows/cols are zero).
    xh = jnp.zeros((B_pad, 2 * Hp), jnp.float32)
    xh = xh.at[:B, :H].set(x)
    xh = xh.at[:B, Hp:Hp + H].set(h0)
    c_pad = jnp.zeros((B_pad, Hp), jnp.float32).at[:B, :H].set(c0)

    nb = B_pad // TB

    y_pad, h_pad, c_pad_out = pl.pallas_call(
        _decoder_kernel,
        grid=(nb,),
        in_specs=[
            pl.BlockSpec((TB, 2 * Hp), lambda b: (b, 0)),      # [x | h] tile
            pl.BlockSpec((TB, Hp), lambda b: (b, 0)),           # c tile
            pl.BlockSpec((2 * Hp, 4 * Hp), lambda b: (0, 0)),   # fused gate W (resident)
            pl.BlockSpec((1, 4 * Hp), lambda b: (0, 0)),        # gate bias (resident)
            pl.BlockSpec((Hp, Op), lambda b: (0, 0)),           # linear W (resident)
            pl.BlockSpec((1, Op), lambda b: (0, 0)),            # linear bias (resident)
        ],
        out_specs=(
            pl.BlockSpec((TB, Op), lambda b: (b, 0)),
            pl.BlockSpec((TB, Hp), lambda b: (b, 0)),
            pl.BlockSpec((TB, Hp), lambda b: (b, 0)),
        ),
        out_shape=(
            jax.ShapeDtypeStruct((B_pad, Op), jnp.float32),
            jax.ShapeDtypeStruct((B_pad, Hp), jnp.float32),
            jax.ShapeDtypeStruct((B_pad, Hp), jnp.float32),
        ),
        compiler_params=pltpu.CompilerParams(
            dimension_semantics=("parallel",)),
    )(xh, c_pad, params["w_gates"], params["b_gates"],
      params["w_lin"], params["b_lin"])

    y = y_pad[:B, :O]
    h_new = h_pad[:B, :H]
    c_new = c_pad_out[:B, :H]
    return y, h_new[None, ...], c_new[None, ...]


def init_params(key, hidden_dim, output_dim):
    """Deterministic init mirroring nn.LSTM / nn.Linear, plus kernel-side
    fused/lane-padded bf16 weight layouts."""
    H, O = hidden_dim, output_dim
    Hp = _round_up(H, LANE)
    Op = _round_up(O, LANE)

    k1, k2, k3, k4, k5, k6 = jax.random.split(key, 6)
    s = 1.0 / jnp.sqrt(hidden_dim)

    # PyTorch shapes: weight_ih_l0 (4H, H), weight_hh_l0 (4H, H), biases (4H,),
    # linear weight (O, H), linear bias (O,). Gate order: i, f, g, o.
    w_ih = jax.random.uniform(k1, (4 * H, H), jnp.float32, -s, s)
    w_hh = jax.random.uniform(k2, (4 * H, H), jnp.float32, -s, s)
    b_ih = jax.random.uniform(k3, (4 * H,), jnp.float32, -s, s)
    b_hh = jax.random.uniform(k4, (4 * H,), jnp.float32, -s, s)
    w_lin = jax.random.uniform(k5, (O, H), jnp.float32, -s, s)
    b_lin = jax.random.uniform(k6, (O,), jnp.float32, -s, s)

    # Fused, lane-padded gate weight: rows [0:H] = x path, rows [Hp:Hp+H] = h
    # path; gate g occupies lane-aligned columns [g*Hp : g*Hp + H].
    w_gates = jnp.zeros((2 * Hp, 4 * Hp), jnp.float32)
    b_gates = jnp.zeros((1, 4 * Hp), jnp.float32)
    for g in range(4):
        w_gates = w_gates.at[0:H, g * Hp:g * Hp + H].set(w_ih[g * H:(g + 1) * H, :].T)
        w_gates = w_gates.at[Hp:Hp + H, g * Hp:g * Hp + H].set(w_hh[g * H:(g + 1) * H, :].T)
        b_gates = b_gates.at[0, g * Hp:g * Hp + H].set(
            b_ih[g * H:(g + 1) * H] + b_hh[g * H:(g + 1) * H])

    w_lin_p = jnp.zeros((Hp, Op), jnp.float32).at[:H, :O].set(w_lin.T)
    b_lin_p = jnp.zeros((1, Op), jnp.float32).at[0, :O].set(b_lin)

    return {
        # Kernel params: bf16 weights (halved DMA bytes, native MXU input),
        # f32 biases, f32 accumulation inside the kernel.
        "w_gates": w_gates.astype(jnp.bfloat16),
        "b_gates": b_gates,
        "w_lin": w_lin_p.astype(jnp.bfloat16),
        "b_lin": b_lin_p,
        "out_dim": O,
        # Raw f32 params, kept for the reference checks.
        "raw": {"w_ih": w_ih, "w_hh": w_hh, "b_ih": b_ih, "b_hh": b_hh,
                "w_lin": w_lin, "b_lin": b_lin},
    }


def _reference_bf16(x, hidden, cell, raw):
    """Pure-JAX replica of the exact kernel math (bf16 MXU inputs, f32 acc)."""
    h, c = hidden[0], cell[0]
    H = h.shape[-1]
    bf = jnp.bfloat16
    gates = (jnp.dot(x.astype(bf), raw["w_ih"].T.astype(bf),
                     preferred_element_type=jnp.float32)
             + jnp.dot(h.astype(bf), raw["w_hh"].T.astype(bf),
                       preferred_element_type=jnp.float32)
             + (raw["b_ih"] + raw["b_hh"])[None, :])
    i = jax.nn.sigmoid(gates[:, 0:H])
    f = jax.nn.sigmoid(gates[:, H:2 * H])
    g = jnp.tanh(gates[:, 2 * H:3 * H])
    o = jax.nn.sigmoid(gates[:, 3 * H:4 * H])
    c_new = f * c + i * g
    h_new = o * jnp.tanh(c_new)
    y = jnp.dot(h_new.astype(bf), raw["w_lin"].T.astype(bf),
                preferred_element_type=jnp.float32) + raw["b_lin"][None, :]
    return y, h_new[None], c_new[None]


def _reference_f32(x, hidden, cell, raw):
    """Full-f32 PyTorch-semantics reference (loose check: bf16 storage drift)."""
    h, c = hidden[0], cell[0]
    H = h.shape[-1]
    gates = x @ raw["w_ih"].T + h @ raw["w_hh"].T + (raw["b_ih"] + raw["b_hh"])[None, :]
    i = jax.nn.sigmoid(gates[:, 0:H])
    f = jax.nn.sigmoid(gates[:, H:2 * H])
    g = jnp.tanh(gates[:, 2 * H:3 * H])
    o = jax.nn.sigmoid(gates[:, 3 * H:4 * H])
    c_new = f * c + i * g
    h_new = o * jnp.tanh(c_new)
    y = h_new @ raw["w_lin"].T + raw["b_lin"][None, :]
    return y, h_new[None], c_new[None]


if __name__ == "__main__":
    batch = 8
    hidden_dim = 32
    output_dim = 16

    key = jax.random.PRNGKey(0)
    kx, kh, kc, kp = jax.random.split(key, 4)

    x = jax.random.normal(kx, (batch, hidden_dim), jnp.float32)
    hidden = jax.random.normal(kh, (1, batch, hidden_dim), jnp.float32)
    cell = jax.random.normal(kc, (1, batch, hidden_dim), jnp.float32)
    params = init_params(kp, hidden_dim, output_dim)

    y, h_new, c_new = decoder_forward(x, hidden, cell, params)
    jax.block_until_ready((y, h_new, c_new))

    # Tight check: same math (bf16 weights / bf16 matmul inputs) in pure JAX.
    y_r, h_r, c_r = _reference_bf16(x, hidden, cell, params["raw"])
    assert jnp.allclose(y, y_r, atol=1e-2), "output mismatch (bf16 reference)"
    assert jnp.allclose(h_new, h_r, atol=1e-2), "hidden mismatch (bf16 reference)"
    assert jnp.allclose(c_new, c_r, atol=1e-2), "cell mismatch (bf16 reference)"

    # Loose check: full-f32 PyTorch semantics (only bf16 weight-storage drift).
    y_f, h_f, c_f = _reference_f32(x, hidden, cell, params["raw"])
    assert jnp.allclose(y, y_f, atol=1e-1), "output drift vs f32 reference"
    assert jnp.allclose(h_new, h_f, atol=1e-1), "hidden drift vs f32 reference"
    assert jnp.allclose(c_new, c_f, atol=1e-1), "cell drift vs f32 reference"

    print("KERNEL_OK")
</pallas_src>

<mosaic_0001>
module attributes {stable_mosaic.version = 11 : i64} {
  func.func @_decoder_kernel(%arg0: i32, %arg1: memref<8x256xf32, #tpu.memory_space<vmem>>, %arg2: memref<8x128xf32, #tpu.memory_space<vmem>>, %arg3: memref<256x512xbf16, #tpu.memory_space<vmem>>, %arg4: memref<1x512xf32, #tpu.memory_space<vmem>>, %arg5: memref<128x128xbf16, #tpu.memory_space<vmem>>, %arg6: memref<1x128xf32, #tpu.memory_space<vmem>>, %arg7: memref<8x128xf32, #tpu.memory_space<vmem>>, %arg8: memref<8x128xf32, #tpu.memory_space<vmem>>, %arg9: memref<8x128xf32, #tpu.memory_space<vmem>>) attributes {dimension_semantics = [#tpu.dimension_semantics<parallel>], iteration_bounds = array<i64: 1>, scalar_prefetch = 0 : i64, scratch_operands = 0 : i64, tpu.core_type = #tpu.core_type<tc>, window_params = [{transform_indices = @transform_0, window_bounds = array<i64: 8, 256>}, {transform_indices = @transform_1, window_bounds = array<i64: 8, 128>}, {pipeline_mode = #tpu.pipeline_mode<synchronous>, transform_indices = @transform_2, window_bounds = array<i64: 256, 512>}, {pipeline_mode = #tpu.pipeline_mode<synchronous>, transform_indices = @transform_3, window_bounds = array<i64: 1, 512>}, {pipeline_mode = #tpu.pipeline_mode<synchronous>, transform_indices = @transform_4, window_bounds = array<i64: 128, 128>}, {pipeline_mode = #tpu.pipeline_mode<synchronous>, transform_indices = @transform_5, window_bounds = array<i64: 1, 128>}, {transform_indices = @transform_6, window_bounds = array<i64: 8, 128>}, {transform_indices = @transform_7, window_bounds = array<i64: 8, 128>}, {transform_indices = @transform_8, window_bounds = array<i64: 8, 128>}]} {
    %c0 = arith.constant 0 : index
    %c0_0 = arith.constant 0 : index
    %0 = vector.load %arg1[%c0, %c0_0] : memref<8x256xf32, #tpu.memory_space<vmem>>, vector<8x256xf32>
    %c0_1 = arith.constant 0 : index
    %c0_2 = arith.constant 0 : index
    %1 = vector.load %arg2[%c0_1, %c0_2] : memref<8x128xf32, #tpu.memory_space<vmem>>, vector<8x128xf32>
    %2 = arith.truncf %0 : vector<8x256xf32> to vector<8x256xbf16>
    %c0_3 = arith.constant 0 : index
    %c0_4 = arith.constant 0 : index
    %3 = vector.load %arg3[%c0_3, %c0_4] : memref<256x512xbf16, #tpu.memory_space<vmem>>, vector<256x512xbf16>
    %cst = arith.constant dense<0.000000e+00> : vector<8x512xf32>
    %4 = tpu.matmul %2, %3, %cst {dimension_numbers = #tpu.dot_dimension_numbers<[1], [0], [0], [1], [0, 0, 1, 1], [], []>} : vector<8x256xbf16>, vector<256x512xbf16>, vector<8x512xf32> -> vector<8x512xf32>
    %c0_5 = arith.constant 0 : index
    %c0_6 = arith.constant 0 : index
    %5 = vector.load %arg4[%c0_5, %c0_6] : memref<1x512xf32, #tpu.memory_space<vmem>>, vector<1x512xf32>
    %6 = vector.broadcast %5 : vector<1x512xf32> to vector<8x512xf32>
    %7 = arith.addf %4, %6 : vector<8x512xf32>
    %8 = vector.extract_strided_slice %7 {offsets = [0, 0], sizes = [8, 128], strides = [1, 1]} : vector<8x512xf32> to vector<8x128xf32>
    %9 = arith.negf %8 : vector<8x128xf32>
    %10 = math.exp %9 : vector<8x128xf32>
    %cst_7 = arith.constant 1.000000e+00 : f32
    %11 = vector.broadcast %cst_7 : f32 to vector<8x128xf32>
    %12 = arith.addf %11, %10 : vector<8x128xf32>
    %13 = arith.divf %11, %12 : vector<8x128xf32>
    %14 = vector.extract_strided_slice %7 {offsets = [0, 128], sizes = [8, 128], strides = [1, 1]} : vector<8x512xf32> to vector<8x128xf32>
    %15 = arith.negf %14 : vector<8x128xf32>
    %16 = math.exp %15 : vector<8x128xf32>
    %cst_8 = arith.constant 1.000000e+00 : f32
    %17 = vector.broadcast %cst_8 : f32 to vector<8x128xf32>
    %18 = arith.addf %17, %16 : vector<8x128xf32>
    %19 = arith.divf %17, %18 : vector<8x128xf32>
    %20 = vector.extract_strided_slice %7 {offsets = [0, 256], sizes = [8, 128], strides = [1, 1]} : vector<8x512xf32> to vector<8x128xf32>
    %21 = math.tanh %20 : vector<8x128xf32>
    %22 = vector.extract_strided_slice %7 {offsets = [0, 384], sizes = [8, 128], strides = [1, 1]} : vector<8x512xf32> to vector<8x128xf32>
    %23 = arith.negf %22 : vector<8x128xf32>
    %24 = math.exp %23 : vector<8x128xf32>
    %cst_9 = arith.constant 1.000000e+00 : f32
    %25 = vector.broadcast %cst_9 : f32 to vector<8x128xf32>
    %26 = arith.addf %25, %24 : vector<8x128xf32>
    %27 = arith.divf %25, %26 : vector<8x128xf32>
    %28 = arith.mulf %19, %1 : vector<8x128xf32>
    %29 = arith.mulf %13, %21 : vector<8x128xf32>
    %30 = arith.addf %28, %29 : vector<8x128xf32>
    %31 = math.tanh %30 : vector<8x128xf32>
    %32 = arith.mulf %27, %31 : vector<8x128xf32>
    %33 = arith.truncf %32 : vector<8x128xf32> to vector<8x128xbf16>
    %c0_10 = arith.constant 0 : index
    %c0_11 = arith.constant 0 : index
    %34 = vector.load %arg5[%c0_10, %c0_11] : memref<128x128xbf16, #tpu.memory_space<vmem>>, vector<128x128xbf16>
    %cst_12 = arith.constant dense<0.000000e+00> : vector<8x128xf32>
    %35 = tpu.matmul %33, %34, %cst_12 {dimension_numbers = #tpu.dot_dimension_numbers<[1], [0], [0], [1], [0, 0, 1, 1], [], []>} : vector<8x128xbf16>, vector<128x128xbf16>, vector<8x128xf32> -> vector<8x128xf32>
    %c0_13 = arith.constant 0 : index
    %c0_14 = arith.constant 0 : index
    %36 = vector.load %arg6[%c0_13, %c0_14] : memref<1x128xf32, #tpu.memory_space<vmem>>, vector<1x128xf32>
    %37 = vector.broadcast %36 : vector<1x128xf32> to vector<8x128xf32>
    %38 = arith.addf %35, %37 : vector<8x128xf32>
    %c0_15 = arith.constant 0 : index
    %c0_16 = arith.constant 0 : index
    %39 = vector.load %arg7[%c0_15, %c0_16] : memref<8x128xf32, #tpu.memory_space<vmem>>, vector<8x128xf32>
    tpu.vector_store %arg7[%c0_15, %c0_16], %38 {strides = array<i32>} : memref<8x128xf32, #tpu.memory_space<vmem>>, vector<8x128xf32>,
    %c0_17 = arith.constant 0 : index
    %c0_18 = arith.constant 0 : index
    %40 = vector.load %arg8[%c0_17, %c0_18] : memref<8x128xf32, #tpu.memory_space<vmem>>, vector<8x128xf32>
    tpu.vector_store %arg8[%c0_17, %c0_18], %32 {strides = array<i32>} : memref<8x128xf32, #tpu.memory_space<vmem>>, vector<8x128xf32>,
    %c0_19 = arith.constant 0 : index
    %c0_20 = arith.constant 0 : index
    %41 = vector.load %arg9[%c0_19, %c0_20] : memref<8x128xf32, #tpu.memory_space<vmem>>, vector<8x128xf32>
    tpu.vector_store %arg9[%c0_19, %c0_20], %30 {strides = array<i32>} : memref<8x128xf32, #tpu.memory_space<vmem>>, vector<8x128xf32>,
    return
  }
  func.func @transform_0(%arg0: i32) -> (i32, i32) {
    %c0_i32 = arith.constant 0 : i32
    %c0_i32_0 = arith.constant 0 : i32
    return %arg0, %c0_i32 : i32, i32
  }
  func.func @transform_1(%arg0: i32) -> (i32, i32) {
    %c0_i32 = arith.constant 0 : i32
    %c0_i32_0 = arith.constant 0 : i32
    return %arg0, %c0_i32 : i32, i32
  }
  func.func @transform_2(%arg0: i32) -> (i32, i32) {
    %c0_i32 = arith.constant 0 : i32
    %c0_i32_0 = arith.constant 0 : i32
    %c0_i32_1 = arith.constant 0 : i32
    return %c0_i32, %c0_i32_0 : i32, i32
  }
  func.func @transform_3(%arg0: i32) -> (i32, i32) {
    %c0_i32 = arith.constant 0 : i32
    %c0_i32_0 = arith.constant 0 : i32
    %c0_i32_1 = arith.constant 0 : i32
    return %c0_i32, %c0_i32_0 : i32, i32
  }
  func.func @transform_4(%arg0: i32) -> (i32, i32) {
    %c0_i32 = arith.constant 0 : i32
    %c0_i32_0 = arith.constant 0 : i32
    %c0_i32_1 = arith.constant 0 : i32
    return %c0_i32, %c0_i32_0 : i32, i32
  }
  func.func @transform_5(%arg0: i32) -> (i32, i32) {
    %c0_i32 = arith.constant 0 : i32
    %c0_i32_0 = arith.constant 0 : i32
    %c0_i32_1 = arith.constant 0 : i32
    return %c0_i32, %c0_i32_0 : i32, i32
  }
  func.func @transform_6(%arg0: i32) -> (i32, i32) {
    %c0_i32 = arith.constant 0 : i32
    %c0_i32_0 = arith.constant 0 : i32
    return %arg0, %c0_i32 : i32, i32
  }
  func.func @transform_7(%arg0: i32) -> (i32, i32) {
    %c0_i32 = arith.constant 0 : i32
    %c0_i32_0 = arith.constant 0 : i32
    return %arg0, %c0_i32 : i32, i32
  }
  func.func @transform_8(%arg0: i32) -> (i32, i32) {
    %c0_i32 = arith.constant 0 : i32
    %c0_i32_0 = arith.constant 0 : i32
    return %arg0, %c0_i32 : i32, i32
  }
}

</mosaic_0001>

<llo_original>
// kernel: tpu_custom_call.1
$region0: #{tpu_custom_call.1}
  #allocation0 [shape = 'u32[]', space=smem, size = 0x4, offset = 0x4, fixed_abs, tag = 'smem constant byte address 0x4 - core index']
  #allocation1 [shape = 'u32[72,128]{1,0:T(1,128)}', space=vmem, size = 0x9000, scoped, tag = 'internal scratch']
  %s0 = inlined_call_operand.hbm [shape: f32[8,256], index: 0, kind: input, shape index: {}]
  %s1 = inlined_call_operand.hbm [shape: f32[8,128], index: 1, kind: input, shape index: {}]
  %s2 = inlined_call_operand.hbm [shape: bf16[256,512], index: 2, kind: input, shape index: {}]
  %s3 = inlined_call_operand.hbm [shape: f32[1,512], index: 3, kind: input, shape index: {}]
  %s4 = inlined_call_operand.hbm [shape: bf16[128,128], index: 4, kind: input, shape index: {}]
  %s5 = inlined_call_operand.vmem [shape: f32[1,128], index: 5, kind: input, shape index: {}]
  %s6 = inlined_call_operand.hbm [shape: f32[8,128], index: 6, kind: output, shape index: {0}]
  %s7 = inlined_call_operand.hbm [shape: f32[8,128], index: 7, kind: output, shape index: {1}]
  %s8 = inlined_call_operand.hbm [shape: f32[8,128], index: 8, kind: output, shape index: {2}]
  %9 = xla_tuple %s6, %s7, %s8
  %s10 = sld [smem:[#allocation0]]
  $region70: #{tpu_custom_call.1} parent=0
    _
  %s12 = ssub.s32 1, %s10
  %s13 = scalar_select 0, %s12, %s10
  $region1: #{tpu_custom_call.1} parent=0
    #allocation2 [shape = 'u8[8192]{0}', space=vmem, size = 0x2000, scoped, tag = 'input window, operand 0, single buffered']
    #allocation3 [shape = 's32[1]{0}', space=sflag, size = 0x4, scoped, tag = 'scoped memory for tpu_custom_call.1']
    #allocation4 [shape = 's32[1]{0}', space=sflag, size = 0x4, scoped, tag = 'scoped memory for tpu_custom_call.1']
    #allocation5 [shape = 'u8[4096]{0}', space=vmem, size = 0x1000, scoped, tag = 'input window, operand 1, single buffered']
    #allocation6 [shape = 's32[1]{0}', space=sflag, size = 0x4, scoped, tag = 'scoped memory for tpu_custom_call.1']
    #allocation7 [shape = 'u8[262144]{0}', space=vmem, size = 0x40000, scoped, tag = 'input window, operand 2, single buffered']
    #allocation8 [shape = 'u8[2048]{0}', space=vmem, size = 0x800, scoped, tag = 'input window, operand 3, single buffered']
    #allocation9 [shape = 's32[1]{0}', space=sflag, size = 0x4, scoped, tag = 'scoped memory for tpu_custom_call.1']
    #allocation10 [shape = 'u8[32768]{0}', space=vmem, size = 0x8000, scoped, tag = 'input window, operand 4, single buffered']
    #allocation11 [shape = 'u8[4096]{0}', space=vmem, size = 0x1000, scoped, tag = 'output window, operand 0, single buffered']
    #allocation12 [shape = 'u8[4096]{0}', space=vmem, size = 0x1000, scoped, tag = 'output window, operand 1, single buffered']
    #allocation13 [shape = 's32[1]{0}', space=sflag, size = 0x4, scoped, tag = 'scoped memory for tpu_custom_call.1']
    #allocation14 [shape = 'u8[4096]{0}', space=vmem, size = 0x1000, scoped, tag = 'output window, operand 2, single buffered']
    %14 = vsyncpa [#allocation3], 0
    %15 = vsyncpa [#allocation6], 0
    %16 = vsyncpa [#allocation9], 0
    %17 = vsyncpa [#allocation4], 0
    %18 = vsyncpa [#allocation13], 0
    // Predicated region
    $region2: #{tpu_custom_call.1} parent=1 // pred_check
      _
    $region3: #{tpu_custom_call.1} parent=1 // pred_check_branch
      %20 = sbr.rel (0) target = $region5
    $region4: #{tpu_custom_call.1} parent=1 // pred_region
      %22 = vsyncadd [#allocation3], 0
      %s24 = sshll.u32 %s0, 4
      %s25 = int_to_ptr.hbm [resolvable:$true] %s24
      %s26 = sshll.u32 [#allocation2], 4
      %s27 = int_to_ptr.vmem [resolvable:$true] %s26
      %29 = dma.hbm_to_vmem [thread:$0]  %s25, 256, %s27, [#allocation3]
    $region5: #{tpu_custom_call.1} parent=1 // pred_fallthru
      _
    // Predicated region
    $region6: #{tpu_custom_call.1} parent=1 // pred_check
      _
    $region7: #{tpu_custom_call.1} parent=1 // pred_check_branch
      %31 = sbr.rel (0) target = $region9
    $region8: #{tpu_custom_call.1} parent=1 // pred_region
      %33 = vsyncadd [#allocation6], 0
      %s35 = sshll.u32 %s1, 4
      %s36 = int_to_ptr.hbm [resolvable:$true] %s35
      %s37 = sshll.u32 [#allocation5], 4
      %s38 = int_to_ptr.vmem [resolvable:$true] %s37
      %40 = dma.hbm_to_vmem [thread:$0]  %s36, 128, %s38, [#allocation6]
    $region9: #{tpu_custom_call.1} parent=1 // pred_fallthru
      _
    // Predicated region
    $region10: #{tpu_custom_call.1} parent=1 // pred_check
      _
    $region11: #{tpu_custom_call.1} parent=1 // pred_check_branch
      %42 = sbr.rel (0) target = $region13
    $region12: #{tpu_custom_call.1} parent=1 // pred_region
      %44 = vsyncadd [#allocation6], 0
      %s45 = sshll.u32 %s2, 4
      %s46 = int_to_ptr.hbm [resolvable:$true] %s45
      %s47 = sshll.u32 [#allocation7], 4
      %s48 = int_to_ptr.vmem [resolvable:$true] %s47
      %53 = dma.hbm_to_vmem [thread:$0]  %s46, 8192, %s48, [#allocation6], 256, 256, 16
    $region13: #{tpu_custom_call.1} parent=1 // pred_fallthru
      _
    // Predicated region
    $region14: #{tpu_custom_call.1} parent=1 // pred_check
      _
    $region15: #{tpu_custom_call.1} parent=1 // pred_check_branch
      %55 = sbr.rel (0) target = $region17
    $region16: #{tpu_custom_call.1} parent=1 // pred_region
      %57 = vsyncadd [#allocation9], 0
      %s59 = sshll.u32 %s3, 4
      %s60 = int_to_ptr.hbm [resolvable:$true] %s59
      %s61 = sshll.u32 [#allocation8], 4
      %s62 = int_to_ptr.vmem [resolvable:$true] %s61
      %64 = dma.hbm_to_vmem [thread:$0]  %s60, 64, %s62, [#allocation9]
    $region17: #{tpu_custom_call.1} parent=1 // pred_fallthru
      _
    // Predicated region
    $region18: #{tpu_custom_call.1} parent=1 // pred_check
      _
    $region19: #{tpu_custom_call.1} parent=1 // pred_check_branch
      %66 = sbr.rel (0) target = $region21
    $region20: #{tpu_custom_call.1} parent=1 // pred_region
      %68 = vsyncadd [#allocation9], 0
      %s69 = sshll.u32 %s4, 4
      %s70 = int_to_ptr.hbm [resolvable:$true] %s69
      %s71 = sshll.u32 [#allocation10], 4
      %s72 = int_to_ptr.vmem [resolvable:$true] %s71
      %77 = dma.hbm_to_vmem [thread:$0]  %s70, 1024, %s72, [#allocation9], 64, 64, 4
    $region21: #{tpu_custom_call.1} parent=1 // pred_fallthru
      _
    // Predicated region
    $region22: #{tpu_custom_call.1} parent=1 // pred_check
      _
    $region23: #{tpu_custom_call.1} parent=1 // pred_check_branch
      %79 = sbr.rel (0) target = $region25
    $region24: #{tpu_custom_call.1} parent=1 // pred_region
      _
    $region25: #{tpu_custom_call.1} parent=1 // pred_fallthru
      _
    // Predicated region
    $region26: #{tpu_custom_call.1} parent=1 // pred_check
      _
    $region27: #{tpu_custom_call.1} parent=1 // pred_check_branch
      %81 = sbr.rel (0) target = $region29
    $region28: #{tpu_custom_call.1} parent=1 // pred_region
      %83 = dma.done [#allocation3], 256
    $region29: #{tpu_custom_call.1} parent=1 // pred_fallthru
      _
    // Predicated region
    $region30: #{tpu_custom_call.1} parent=1 // pred_check
      _
    $region31: #{tpu_custom_call.1} parent=1 // pred_check_branch
      %85 = sbr.rel (0) target = $region33
    $region32: #{tpu_custom_call.1} parent=1 // pred_region
      %87 = dma.done [#allocation6], 128
    $region33: #{tpu_custom_call.1} parent=1 // pred_fallthru
      _
    // Predicated region
    $region34: #{tpu_custom_call.1} parent=1 // pred_check
      _
    $region35: #{tpu_custom_call.1} parent=1 // pred_check_branch
      %89 = sbr.rel (0) target = $region37
    $region36: #{tpu_custom_call.1} parent=1 // pred_region
      %91 = dma.done [#allocation6], 8192
    $region37: #{tpu_custom_call.1} parent=1 // pred_fallthru
      _
    // Predicated region
    $region38: #{tpu_custom_call.1} parent=1 // pred_check
      _
    $region39: #{tpu_custom_call.1} parent=1 // pred_check_branch
      %93 = sbr.rel (0) target = $region41
    $region40: #{tpu_custom_call.1} parent=1 // pred_region
      %95 = dma.done [#allocation9], 64
    $region41: #{tpu_custom_call.1} parent=1 // pred_fallthru
      _
    // Predicated region
    $region42: #{tpu_custom_call.1} parent=1 // pred_check
      _
    $region43: #{tpu_custom_call.1} parent=1 // pred_check_branch
      %97 = sbr.rel (0) target = $region45
    $region44: #{tpu_custom_call.1} parent=1 // pred_region
      %99 = dma.done [#allocation9], 1024
    $region45: #{tpu_custom_call.1} parent=1 // pred_fallthru
      _
    %v100 = vld [vmem:[#allocation2] sm:$0xff]
    %v101 = vld [vmem:[#allocation2 + $0x8] sm:$0xff]
    %v102 = vld [vmem:[#allocation5] sm:$0xff]
    %v103 = vpack.c.bf16 %v100, %v100
    %v104 = vpack.c.bf16 %v101, %v101
    %v105 = vld [vmem:[#allocation7] sm:$0xff]
    %v106 = vld [vmem:[#allocation7 + $0x8] sm:$0xff]
    %v107 = vld [vmem:[#allocation7 + $0x10] sm:$0xff]
    %v108 = vld [vmem:[#allocation7 + $0x18] sm:$0xff]
    %v109 = vld [vmem:[#allocation7 + $0x20] sm:$0xff]
    %v110 = vld [vmem:[#allocation7 + $0x28] sm:$0xff]
    %v111 = vld [vmem:[#allocation7 + $0x30] sm:$0xff]
    %v112 = vld [vmem:[#allocation7 + $0x38] sm:$0xff]
    %v113 = vld [vmem:[#allocation7 + $0x40] sm:$0xff]
    %v114 = vld [vmem:[#allocation7 + $0x48] sm:$0xff]
    %v115 = vld [vmem:[#allocation7 + $0x50] sm:$0xff]
    %v116 = vld [vmem:[#allocation7 + $0x58] sm:$0xff]
    %v117 = vld [vmem:[#allocation7 + $0x60] sm:$0xff]
    %v118 = vld [vmem:[#allocation7 + $0x68] sm:$0xff]
    %v119 = vld [vmem:[#allocation7 + $0x70] sm:$0xff]
    %v120 = vld [vmem:[#allocation7 + $0x78] sm:$0xff]
    %v121 = vld [vmem:[#allocation7 + $0x80] sm:$0xff]
    %v122 = vld [vmem:[#allocation7 + $0x88] sm:$0xff]
    %v123 = vld [vmem:[#allocation7 + $0x90] sm:$0xff]
    %v124 = vld [vmem:[#allocation7 + $0x98] sm:$0xff]
    %v125 = vld [vmem:[#allocation7 + $0xa0] sm:$0xff]
    %v126 = vld [vmem:[#allocation7 + $0xa8] sm:$0xff]
    %v127 = vld [vmem:[#allocation7 + $0xb0] sm:$0xff]
    %v128 = vld [vmem:[#allocation7 + $0xb8] sm:$0xff]
    %v129 = vld [vmem:[#allocation7 + $0xc0] sm:$0xff]
    %v130 = vld [vmem:[#allocation7 + $0xc8] sm:$0xff]
    %v131 = vld [vmem:[#allocation7 + $0xd0] sm:$0xff]
    %v132 = vld [vmem:[#allocation7 + $0xd8] sm:$0xff]
    %v133 = vld [vmem:[#allocation7 + $0xe0] sm:$0xff]
    %v134 = vld [vmem:[#allocation7 + $0xe8] sm:$0xff]
    %v135 = vld [vmem:[#allocation7 + $0xf0] sm:$0xff]
    %v136 = vld [vmem:[#allocation7 + $0xf8] sm:$0xff]
    %v137 = vld [vmem:[#allocation7 + $0x100] sm:$0xff]
    %v138 = vld [vmem:[#allocation7 + $0x108] sm:$0xff]
    %v139 = vld [vmem:[#allocation7 + $0x110] sm:$0xff]
    %v140 = vld [vmem:[#allocation7 + $0x118] sm:$0xff]
    %v141 = vld [vmem:[#allocation7 + $0x120] sm:$0xff]
    %v142 = vld [vmem:[#allocation7 + $0x128] sm:$0xff]
    %v143 = vld [vmem:[#allocation7 + $0x130] sm:$0xff]
    %v144 = vld [vmem:[#allocation7 + $0x138] sm:$0xff]
    %v145 = vld [vmem:[#allocation7 + $0x140] sm:$0xff]
    %v146 = vld [vmem:[#allocation7 + $0x148] sm:$0xff]
    %v147 = vld [vmem:[#allocation7 + $0x150] sm:$0xff]
    %v148 = vld [vmem:[#allocation7 + $0x158] sm:$0xff]
    %v149 = vld [vmem:[#allocation7 + $0x160] sm:$0xff]
    %v150 = vld [vmem:[#allocation7 + $0x168] sm:$0xff]
    %v151 = vld [vmem:[#allocation7 + $0x170] sm:$0xff]
    %v152 = vld [vmem:[#allocation7 + $0x178] sm:$0xff]
    %v153 = vld [vmem:[#allocation7 + $0x180] sm:$0xff]
    %v154 = vld [vmem:[#allocation7 + $0x188] sm:$0xff]
    %v155 = vld [vmem:[#allocation7 + $0x190] sm:$0xff]
    %v156 = vld [vmem:[#allocation7 + $0x198] sm:$0xff]
    %v157 = vld [vmem:[#allocation7 + $0x1a0] sm:$0xff]
    %v158 = vld [vmem:[#allocation7 + $0x1a8] sm:$0xff]
    %v159 = vld [vmem:[#allocation7 + $0x1b0] sm:$0xff]
    %v160 = vld [vmem:[#allocation7 + $0x1b8] sm:$0xff]
    %v161 = vld [vmem:[#allocation7 + $0x1c0] sm:$0xff]
    %v162 = vld [vmem:[#allocation7 + $0x1c8] sm:$0xff]
    %v163 = vld [vmem:[#allocation7 + $0x1d0] sm:$0xff]
    %v164 = vld [vmem:[#allocation7 + $0x1d8] sm:$0xff]
    %v165 = vld [vmem:[#allocation7 + $0x1e0] sm:$0xff]
    %v166 = vld [vmem:[#allocation7 + $0x1e8] sm:$0xff]
    %v167 = vld [vmem:[#allocation7 + $0x1f0] sm:$0xff]
    %v168 = vld [vmem:[#allocation7 + $0x1f8] sm:$0xff]
    %v169 = vld [vmem:[#allocation8] sm:$0xf]
    %v171 = vperm.slane %v169, 0
    %v172 = vperm.slane %v169, 1
    %v173 = vperm.slane %v169, 2
    %v174 = vperm.slane %v169, 3
    %v243 = vunpack.c.l.b16 %v105
    %v244 = vunpack.c.h.b16 %v105
    %v245 = vunpack.c.l.b16 %v106
    %v246 = vunpack.c.h.b16 %v106
    %v247 = vunpack.c.l.b16 %v107
    %v248 = vunpack.c.h.b16 %v107
    %v249 = vunpack.c.l.b16 %v108
    %v250 = vunpack.c.h.b16 %v108
    %v251 = vunpack.c.l.b16 %v109
    %v252 = vunpack.c.h.b16 %v109
    %v253 = vunpack.c.l.b16 %v110
    %v254 = vunpack.c.h.b16 %v110
    %v255 = vunpack.c.l.b16 %v111
    %v256 = vunpack.c.h.b16 %v111
    %v257 = vunpack.c.l.b16 %v112
    %v258 = vunpack.c.h.b16 %v112
    %v259 = vunpack.c.l.b16 %v113
    %v260 = vunpack.c.h.b16 %v113
    %v261 = vunpack.c.l.b16 %v114
    %v262 = vunpack.c.h.b16 %v114
    %v263 = vunpack.c.l.b16 %v115
    %v264 = vunpack.c.h.b16 %v115
    %v265 = vunpack.c.l.b16 %v116
    %v266 = vunpack.c.h.b16 %v116
    %v267 = vunpack.c.l.b16 %v117
    %v268 = vunpack.c.h.b16 %v117
    %v269 = vunpack.c.l.b16 %v118
    %v270 = vunpack.c.h.b16 %v118
    %v271 = vunpack.c.l.b16 %v119
    %v272 = vunpack.c.h.b16 %v119
    %v273 = vunpack.c.l.b16 %v120
    %v274 = vunpack.c.h.b16 %v120
    %v275 = vunpack.c.l.b16 %v121
    %v276 = vunpack.c.h.b16 %v121
    %v277 = vunpack.c.l.b16 %v122
    %v278 = vunpack.c.h.b16 %v122
    %v279 = vunpack.c.l.b16 %v123
    %v280 = vunpack.c.h.b16 %v123
    %v281 = vunpack.c.l.b16 %v124
    %v282 = vunpack.c.h.b16 %v124
    %v283 = vunpack.c.l.b16 %v125
    %v284 = vunpack.c.h.b16 %v125
    %v285 = vunpack.c.l.b16 %v126
    %v286 = vunpack.c.h.b16 %v126
    %v287 = vunpack.c.l.b16 %v127
    %v288 = vunpack.c.h.b16 %v127
    %v289 = vunpack.c.l.b16 %v128
    %v290 = vunpack.c.h.b16 %v128
    %v291 = vunpack.c.l.b16 %v129
    %v292 = vunpack.c.h.b16 %v129
    %v293 = vunpack.c.l.b16 %v130
    %v294 = vunpack.c.h.b16 %v130
    %v295 = vunpack.c.l.b16 %v131
    %v296 = vunpack.c.h.b16 %v131
    %v297 = vunpack.c.l.b16 %v132
    %v298 = vunpack.c.h.b16 %v132
    %v299 = vunpack.c.l.b16 %v133
    %v300 = vunpack.c.h.b16 %v133
    %v301 = vunpack.c.l.b16 %v134
    %v302 = vunpack.c.h.b16 %v134
    %v303 = vunpack.c.l.b16 %v135
    %v304 = vunpack.c.h.b16 %v135
    %v305 = vunpack.c.l.b16 %v136
    %v306 = vunpack.c.h.b16 %v136
    %v307 = vunpack.c.l.b16 %v137
    %v308 = vunpack.c.h.b16 %v137
    %v309 = vunpack.c.l.b16 %v138
    %v310 = vunpack.c.h.b16 %v138
    %v311 = vunpack.c.l.b16 %v139
    %v312 = vunpack.c.h.b16 %v139
    %v313 = vunpack.c.l.b16 %v140
    %v314 = vunpack.c.h.b16 %v140
    %v315 = vunpack.c.l.b16 %v141
    %v316 = vunpack.c.h.b16 %v141
    %v317 = vunpack.c.l.b16 %v142
    %v318 = vunpack.c.h.b16 %v142
    %v319 = vunpack.c.l.b16 %v143
    %v320 = vunpack.c.h.b16 %v143
    %v321 = vunpack.c.l.b16 %v144
    %v322 = vunpack.c.h.b16 %v144
    %v323 = vunpack.c.l.b16 %v145
    %v324 = vunpack.c.h.b16 %v145
    %v325 = vunpack.c.l.b16 %v146
    %v326 = vunpack.c.h.b16 %v146
    %v327 = vunpack.c.l.b16 %v147
    %v328 = vunpack.c.h.b16 %v147
    %v329 = vunpack.c.l.b16 %v148
    %v330 = vunpack.c.h.b16 %v148
    %v331 = vunpack.c.l.b16 %v149
    %v332 = vunpack.c.h.b16 %v149
    %v333 = vunpack.c.l.b16 %v150
    %v334 = vunpack.c.h.b16 %v150
    %v335 = vunpack.c.l.b16 %v151
    %v336 = vunpack.c.h.b16 %v151
    %v337 = vunpack.c.l.b16 %v152
    %v338 = vunpack.c.h.b16 %v152
    %v339 = vunpack.c.l.b16 %v153
    %v340 = vunpack.c.h.b16 %v153
    %v341 = vunpack.c.l.b16 %v154
    %v342 = vunpack.c.h.b16 %v154
    %v343 = vunpack.c.l.b16 %v155
    %v344 = vunpack.c.h.b16 %v155
    %v345 = vunpack.c.l.b16 %v156
    %v346 = vunpack.c.h.b16 %v156
    %v347 = vunpack.c.l.b16 %v157
    %v348 = vunpack.c.h.b16 %v157
    %v349 = vunpack.c.l.b16 %v158
    %v350 = vunpack.c.h.b16 %v158
    %v351 = vunpack.c.l.b16 %v159
    %v352 = vunpack.c.h.b16 %v159
    %v353 = vunpack.c.l.b16 %v160
    %v354 = vunpack.c.h.b16 %v160
    %v355 = vunpack.c.l.b16 %v161
    %v356 = vunpack.c.h.b16 %v161
    %v357 = vunpack.c.l.b16 %v162
    %v358 = vunpack.c.h.b16 %v162
    %v359 = vunpack.c.l.b16 %v163
    %v360 = vunpack.c.h.b16 %v163
    %v361 = vunpack.c.l.b16 %v164
    %v362 = vunpack.c.h.b16 %v164
    %v363 = vunpack.c.l.b16 %v165
    %v364 = vunpack.c.h.b16 %v165
    %v365 = vunpack.c.l.b16 %v166
    %v366 = vunpack.c.h.b16 %v166
    %v367 = vunpack.c.l.b16 %v167
    %v368 = vunpack.c.h.b16 %v167
    %v369 = vunpack.c.l.b16 %v168
    %v370 = vunpack.c.h.b16 %v168
    %v371 = vpack.c.b16 %v247, %v243
    %v372 = vpack.c.b16 %v248, %v244
    %v373 = vpack.c.b16 %v249, %v245
    %v374 = vpack.c.b16 %v250, %v246
    %v375 = vpack.c.b16 %v255, %v251
    %v376 = vpack.c.b16 %v256, %v252
    %v377 = vpack.c.b16 %v257, %v253
    %v378 = vpack.c.b16 %v258, %v254
    %v379 = vpack.c.b16 %v263, %v259
    %v380 = vpack.c.b16 %v264, %v260
    %v381 = vpack.c.b16 %v265, %v261
    %v382 = vpack.c.b16 %v266, %v262
    %v383 = vpack.c.b16 %v271, %v267
    %v384 = vpack.c.b16 %v272, %v268
    %v385 = vpack.c.b16 %v273, %v269
    %v386 = vpack.c.b16 %v274, %v270
    %v387 = vpack.c.b16 %v279, %v275
    %v388 = vpack.c.b16 %v280, %v276
    %v389 = vpack.c.b16 %v281, %v277
    %v390 = vpack.c.b16 %v282, %v278
    %v391 = vpack.c.b16 %v287, %v283
    %v392 = vpack.c.b16 %v288, %v284
    %v393 = vpack.c.b16 %v289, %v285
    %v394 = vpack.c.b16 %v290, %v286
    %v395 = vpack.c.b16 %v295, %v291
    %v396 = vpack.c.b16 %v296, %v292
    %v397 = vpack.c.b16 %v297, %v293
    %v398 = vpack.c.b16 %v298, %v294
    %v399 = vpack.c.b16 %v303, %v299
    %v400 = vpack.c.b16 %v304, %v300
    %v401 = vpack.c.b16 %v305, %v301
    %v402 = vpack.c.b16 %v306, %v302
    %v403 = vpack.c.b16 %v311, %v307
    %v404 = vpack.c.b16 %v312, %v308
    %v405 = vpack.c.b16 %v313, %v309
    %v406 = vpack.c.b16 %v314, %v310
    %v407 = vpack.c.b16 %v319, %v315
    %v408 = vpack.c.b16 %v320, %v316
    %v409 = vpack.c.b16 %v321, %v317
    %v410 = vpack.c.b16 %v322, %v318
    %v411 = vpack.c.b16 %v327, %v323
    %v412 = vpack.c.b16 %v328, %v324
    %v413 = vpack.c.b16 %v329, %v325
    %v414 = vpack.c.b16 %v330, %v326
    %v415 = vpack.c.b16 %v335, %v331
    %v416 = vpack.c.b16 %v336, %v332
    %v417 = vpack.c.b16 %v337, %v333
    %v418 = vpack.c.b16 %v338, %v334
    %v419 = vpack.c.b16 %v343, %v339
    %v420 = vpack.c.b16 %v344, %v340
    %v421 = vpack.c.b16 %v345, %v341
    %v422 = vpack.c.b16 %v346, %v342
    %v423 = vpack.c.b16 %v351, %v347
    %v424 = vpack.c.b16 %v352, %v348
    %v425 = vpack.c.b16 %v353, %v349
    %v426 = vpack.c.b16 %v354, %v350
    %v427 = vpack.c.b16 %v359, %v355
    %v428 = vpack.c.b16 %v360, %v356
    %v429 = vpack.c.b16 %v361, %v357
    %v430 = vpack.c.b16 %v362, %v358
    %v431 = vpack.c.b16 %v367, %v363
    %v432 = vpack.c.b16 %v368, %v364
    %v433 = vpack.c.b16 %v369, %v365
    %v434 = vpack.c.b16 %v370, %v366
    %499 = vmatpush.bf16.msra.mxu0 %v399
    %500 = vmatpush.bf16.msra.mxu0 %v395
    %501 = vmatpush.bf16.msra.mxu0 %v391
    %502 = vmatpush.bf16.msra.mxu0 %v387
    %503 = vmatpush.bf16.msra.mxu0 %v383
    %504 = vmatpush.bf16.msra.mxu0 %v379
    %505 = vmatpush.bf16.msra.mxu0 %v375
    %506 = vmatpush.bf16.msra.mxu0 %v371
    %507 = vmatmul.bf16.gmra.mxu0 %v103
    %v508 = vpop.f32.mrf.mxu0
    %v509 = vadd.f32 %v171, %v508
    %v510 = vpop.f32.mrf.mxu0
    %511 = vdwg.mxu0
    %512 = vmatpush.bf16.msra.mxu0 %v431
    %513 = vmatpush.bf16.msra.mxu0 %v427
    %514 = vmatpush.bf16.msra.mxu0 %v423
    %515 = vmatpush.bf16.msra.mxu0 %v419
    %516 = vmatpush.bf16.msra.mxu0 %v415
    %517 = vmatpush.bf16.msra.mxu0 %v411
    %518 = vmatpush.bf16.msra.mxu0 %v407
    %519 = vmatpush.bf16.msra.mxu0 %v403
    %520 = vmatmul.bf16.gmra.mxu0 %v104
    %v521 = vpop.f32.mrf.mxu0
    %v522 = vadd.f32 %v509, %v521
    %v523 = vpop.f32.mrf.mxu0
    %524 = vdwg.mxu0
    %525 = vmatpush.bf16.msra.mxu0 %v400
    %526 = vmatpush.bf16.msra.mxu0 %v396
    %527 = vmatpush.bf16.msra.mxu0 %v392
    %528 = vmatpush.bf16.msra.mxu0 %v388
    %529 = vmatpush.bf16.msra.mxu0 %v384
    %530 = vmatpush.bf16.msra.mxu0 %v380
    %531 = vmatpush.bf16.msra.mxu0 %v376
    %532 = vmatpush.bf16.msra.mxu0 %v372
    %533 = vmatmul.bf16.gmra.mxu0 %v103
    %v534 = vpop.f32.mrf.mxu0
    %v535 = vadd.f32 %v172, %v534
    %v536 = vpop.f32.mrf.mxu0
    %537 = vdwg.mxu0
    %538 = vmatpush.bf16.msra.mxu0 %v432
    %539 = vmatpush.bf16.msra.mxu0 %v428
    %540 = vmatpush.bf16.msra.mxu0 %v424
    %541 = vmatpush.bf16.msra.mxu0 %v420
    %542 = vmatpush.bf16.msra.mxu0 %v416
    %543 = vmatpush.bf16.msra.mxu0 %v412
    %544 = vmatpush.bf16.msra.mxu0 %v408
    %545 = vmatpush.bf16.msra.mxu0 %v404
    %546 = vmatmul.bf16.gmra.mxu0 %v104
    %v547 = vpop.f32.mrf.mxu0
    %v548 = vadd.f32 %v535, %v547
    %v549 = vpop.f32.mrf.mxu0
    %550 = vdwg.mxu0
    %551 = vmatpush.bf16.msra.mxu0 %v401
    %552 = vmatpush.bf16.msra.mxu0 %v397
    %553 = vmatpush.bf16.msra.mxu0 %v393
    %554 = vmatpush.bf16.msra.mxu0 %v389
    %555 = vmatpush.bf16.msra.mxu0 %v385
    %556 = vmatpush.bf16.msra.mxu0 %v381
    %557 = vmatpush.bf16.msra.mxu0 %v377
    %558 = vmatpush.bf16.msra.mxu0 %v373
    %559 = vmatmul.bf16.gmra.mxu0 %v103
    %v560 = vpop.f32.mrf.mxu0
    %v561 = vadd.f32 %v173, %v560
    %v562 = vpop.f32.mrf.mxu0
    %563 = vdwg.mxu0
    %564 = vmatpush.bf16.msra.mxu0 %v433
    %565 = vmatpush.bf16.msra.mxu0 %v429
    %566 = vmatpush.bf16.msra.mxu0 %v425
    %567 = vmatpush.bf16.msra.mxu0 %v421
    %568 = vmatpush.bf16.msra.mxu0 %v417
    %569 = vmatpush.bf16.msra.mxu0 %v413
    %570 = vmatpush.bf16.msra.mxu0 %v409
    %571 = vmatpush.bf16.msra.mxu0 %v405
    %572 = vmatmul.bf16.gmra.mxu0 %v104
    %v573 = vpop.f32.mrf.mxu0
    %v574 = vadd.f32 %v561, %v573
    %v575 = vpop.f32.mrf.mxu0
    %576 = vdwg.mxu0
    %577 = vmatpush.bf16.msra.mxu0 %v402
    %578 = vmatpush.bf16.msra.mxu0 %v398
    %579 = vmatpush.bf16.msra.mxu0 %v394
    %580 = vmatpush.bf16.msra.mxu0 %v390
    %581 = vmatpush.bf16.msra.mxu0 %v386
    %582 = vmatpush.bf16.msra.mxu0 %v382
    %583 = vmatpush.bf16.msra.mxu0 %v378
    %584 = vmatpush.bf16.msra.mxu0 %v374
    %585 = vmatmul.bf16.gmra.mxu0 %v103
    %v586 = vpop.f32.mrf.mxu0
    %v587 = vadd.f32 %v174, %v586
    %v588 = vpop.f32.mrf.mxu0
    %589 = vdwg.mxu0
    %590 = vmatpush.bf16.msra.mxu0 %v434
    %591 = vmatpush.bf16.msra.mxu0 %v430
    %592 = vmatpush.bf16.msra.mxu0 %v426
    %593 = vmatpush.bf16.msra.mxu0 %v422
    %594 = vmatpush.bf16.msra.mxu0 %v418
    %595 = vmatpush.bf16.msra.mxu0 %v414
    %596 = vmatpush.bf16.msra.mxu0 %v410
    %597 = vmatpush.bf16.msra.mxu0 %v406
    %598 = vmatmul.bf16.gmra.mxu0 %v104
    %v599 = vpop.f32.mrf.mxu0
    %v600 = vadd.f32 %v587, %v599
    %v601 = vpop.f32.mrf.mxu0
    %602 = vdwg.mxu0
    %v603 = vxor.u32 %v522, 2147483648
    %v604 = vmul.f32 %v603, 1.442695
    %v605 = vpow.pop %v604
    %v606 = vadd.f32 %v605, 1.0
    %v607 = vrcp.pop %v606
    %v608 = vmul.f32 %v606, %v607
    %v609 = vsub.f32 1.0, %v608
    %v610 = vmul.f32 %v607, %v609
    %v611 = vadd.f32 %v607, %v610
    %vm612 = vweird.f32 %v606
    %vm613 = vweird.f32 %v607
    %vm614 = vmor %vm612, %vm613
    %v615 = vsel %vm614, %v607, %v611
    %v616 = vand.u32 2147483647, %v606
    %vm617 = vcmp.eq.f32.partialorder %v616, 8.507059e+37
    %v618 = vand.u32 %v606, 2147483648
    %v619 = vor.u32 1.1754944e-38, %v618
    %v620 = vsel %vm617, %v619, %v615
    %v621 = vmul.f32 1.0, %v620
    %v622 = vxor.u32 %v548, 2147483648
    %v623 = vmul.f32 %v622, 1.442695
    %v624 = vpow.pop %v623
    %v625 = vadd.f32 %v624, 1.0
    %v626 = vrcp.pop %v625
    %v627 = vmul.f32 %v625, %v626
    %v628 = vsub.f32 1.0, %v627
    %v629 = vmul.f32 %v626, %v628
    %v630 = vadd.f32 %v626, %v629
    %vm631 = vweird.f32 %v625
    %vm632 = vweird.f32 %v626
    %vm633 = vmor %vm631, %vm632
    %v634 = vsel %vm633, %v626, %v630
    %v635 = vand.u32 2147483647, %v625
    %vm636 = vcmp.eq.f32.partialorder %v635, 8.507059e+37
    %v637 = vand.u32 %v625, 2147483648
    %v638 = vor.u32 1.1754944e-38, %v637
    %v639 = vsel %vm636, %v638, %v634
    %v640 = vmul.f32 1.0, %v639
    %v641 = vtanh.pop %v574
    %v642 = vxor.u32 %v600, 2147483648
    %v643 = vmul.f32 %v642, 1.442695
    %v644 = vpow.pop %v643
    %v645 = vadd.f32 %v644, 1.0
    %v646 = vrcp.pop %v645
    %v647 = vmul.f32 %v645, %v646
    %v648 = vsub.f32 1.0, %v647
    %v649 = vmul.f32 %v646, %v648
    %v650 = vadd.f32 %v646, %v649
    %vm651 = vweird.f32 %v645
    %vm652 = vweird.f32 %v646
    %vm653 = vmor %vm651, %vm652
    %v654 = vsel %vm653, %v646, %v650
    %v655 = vand.u32 2147483647, %v645
    %vm656 = vcmp.eq.f32.partialorder %v655, 8.507059e+37
    %v657 = vand.u32 %v645, 2147483648
    %v658 = vor.u32 1.1754944e-38, %v657
    %v659 = vsel %vm656, %v658, %v654
    %v660 = vmul.f32 1.0, %v659
    %v661 = vmul.f32 %v640, %v102
    %v662 = vmul.f32 %v621, %v641
    %v663 = vadd.f32 %v661, %v662
    %v664 = vtanh.pop %v663
    %v665 = vmul.f32 %v660, %v664
    %v666 = vpack.c.bf16 %v665, %v665
    %v667 = vld [vmem:[#allocation10] sm:$0xf]
    %v668 = vld [vmem:[#allocation10 + $0x4] sm:$0xf]
    %v669 = vld [vmem:[#allocation10 + $0x8] sm:$0xf]
    %v670 = vld [vmem:[#allocation10 + $0xc] sm:$0xf]
    %v671 = vld [vmem:[#allocation10 + $0x10] sm:$0xf]
    %v672 = vld [vmem:[#allocation10 + $0x14] sm:$0xf]
    %v673 = vld [vmem:[#allocation10 + $0x18] sm:$0xf]
    %v674 = vld [vmem:[#allocation10 + $0x1c] sm:$0xf]
    %v675 = vld [vmem:[#allocation10 + $0x20] sm:$0xf]
    %v676 = vld [vmem:[#allocation10 + $0x24] sm:$0xf]
    %v677 = vld [vmem:[#allocation10 + $0x28] sm:$0xf]
    %v678 = vld [vmem:[#allocation10 + $0x2c] sm:$0xf]
    %v679 = vld [vmem:[#allocation10 + $0x30] sm:$0xf]
    %v680 = vld [vmem:[#allocation10 + $0x34] sm:$0xf]
    %v681 = vld [vmem:[#allocation10 + $0x38] sm:$0xf]
    %v682 = vld [vmem:[#allocation10 + $0x3c] sm:$0xf]
    %v683 = vld [vmem:[%s5] sm:$0x1]
    %v685 = vperm.slane %v683, 0
    %v703 = vunpack.c.l.b16 %v667
    %v704 = vunpack.c.l.b16 %v668
    %v705 = vunpack.c.l.b16 %v669
    %v706 = vunpack.c.l.b16 %v670
    %v707 = vunpack.c.l.b16 %v671
    %v708 = vunpack.c.l.b16 %v672
    %v709 = vunpack.c.l.b16 %v673
    %v710 = vunpack.c.l.b16 %v674
    %v711 = vunpack.c.l.b16 %v675
    %v712 = vunpack.c.l.b16 %v676
    %v713 = vunpack.c.l.b16 %v677
    %v714 = vunpack.c.l.b16 %v678
    %v715 = vunpack.c.l.b16 %v679
    %v716 = vunpack.c.l.b16 %v680
    %v717 = vunpack.c.l.b16 %v681
    %v718 = vunpack.c.l.b16 %v682
    %v719 = vpack.c.b16 %v704, %v703
    %v720 = vpack.c.b16 %v706, %v705
    %v721 = vpack.c.b16 %v708, %v707
    %v722 = vpack.c.b16 %v710, %v709
    %v723 = vpack.c.b16 %v712, %v711
    %v724 = vpack.c.b16 %v714, %v713
    %v725 = vpack.c.b16 %v716, %v715
    %v726 = vpack.c.b16 %v718, %v717
    %735 = vmatpush.bf16.msra.mxu0 %v726
    %736 = vmatpush.bf16.msra.mxu0 %v725
    %737 = vmatpush.bf16.msra.mxu0 %v724
    %738 = vmatpush.bf16.msra.mxu0 %v723
    %739 = vmatpush.bf16.msra.mxu0 %v722
    %740 = vmatpush.bf16.msra.mxu0 %v721
    %741 = vmatpush.bf16.msra.mxu0 %v720
    %742 = vmatpush.bf16.msra.mxu0 %v719
    %743 = vmatmul.bf16.gmra.mxu0 %v666
    %v744 = vpop.f32.mrf.mxu0
    %v745 = vadd.f32 %v685, %v744
    %v746 = vpop.f32.mrf.mxu0
    %747 = vdwg.mxu0
    %748 = vst [vmem:[#allocation11] sm:$0xff] %v745
    %749 = vst [vmem:[#allocation12] sm:$0xff] %v665
    %750 = vst [vmem:[#allocation14] sm:$0xff] %v663
    // Predicated region
    $region46: #{tpu_custom_call.1} parent=1 // pred_check
      _
    $region47: #{tpu_custom_call.1} parent=1 // pred_check_branch
      %752 = sbr.rel (0) target = $region49
    $region48: #{tpu_custom_call.1} parent=1 // pred_region
      %754 = vsyncadd [#allocation4], 0
      %s756 = sshll.u32 [#allocation11], 4
      %s757 = int_to_ptr.vmem [resolvable:$true] %s756
      %s758 = sshll.u32 %s6, 4
      %s759 = int_to_ptr.hbm [resolvable:$true] %s758
      %761 = dma.vmem_to_hbm [thread:$0]  %s757, 128, %s759, [#allocation4]
    $region49: #{tpu_custom_call.1} parent=1 // pred_fallthru
      _
    // Predicated region
    $region50: #{tpu_custom_call.1} parent=1 // pred_check
      _
    $region51: #{tpu_custom_call.1} parent=1 // pred_check_branch
      %763 = sbr.rel (0) target = $region53
    $region52: #{tpu_custom_call.1} parent=1 // pred_region
      %765 = vsyncadd [#allocation13], 0
      %s767 = sshll.u32 [#allocation12], 4
      %s768 = int_to_ptr.vmem [resolvable:$true] %s767
      %s769 = sshll.u32 %s7, 4
      %s770 = int_to_ptr.hbm [resolvable:$true] %s769
      %772 = dma.vmem_to_hbm [thread:$0]  %s768, 128, %s770, [#allocation13]
    $region53: #{tpu_custom_call.1} parent=1 // pred_fallthru
      _
    // Predicated region
    $region54: #{tpu_custom_call.1} parent=1 // pred_check
      _
    $region55: #{tpu_custom_call.1} parent=1 // pred_check_branch
      %774 = sbr.rel (0) target = $region57
    $region56: #{tpu_custom_call.1} parent=1 // pred_region
      %776 = vsyncadd [#allocation13], 0
      %s778 = sshll.u32 [#allocation14], 4
      %s779 = int_to_ptr.vmem [resolvable:$true] %s778
      %s780 = sshll.u32 %s8, 4
      %s781 = int_to_ptr.hbm [resolvable:$true] %s780
      %783 = dma.vmem_to_hbm [thread:$0]  %s779, 128, %s781, [#allocation13]
    $region57: #{tpu_custom_call.1} parent=1 // pred_fallthru
      _
    // Predicated region
    $region58: #{tpu_custom_call.1} parent=1 // pred_check
      _
    $region59: #{tpu_custom_call.1} parent=1 // pred_check_branch
      %785 = sbr.rel (0) target = $region61
    $region60: #{tpu_custom_call.1} parent=1 // pred_region
      %787 = dma.done [#allocation4], 128
    $region61: #{tpu_custom_call.1} parent=1 // pred_fallthru
      _
    // Predicated region
    $region62: #{tpu_custom_call.1} parent=1 // pred_check
      _
    $region63: #{tpu_custom_call.1} parent=1 // pred_check_branch
      %789 = sbr.rel (0) target = $region65
    $region64: #{tpu_custom_call.1} parent=1 // pred_region
      %791 = dma.done [#allocation13], 128
    $region65: #{tpu_custom_call.1} parent=1 // pred_fallthru
      _
    // Predicated region
    $region66: #{tpu_custom_call.1} parent=1 // pred_check
      _
    $region67: #{tpu_custom_call.1} parent=1 // pred_check_branch
      %793 = sbr.rel (0) target = $region69
    $region68: #{tpu_custom_call.1} parent=1 // pred_region
      %795 = dma.done [#allocation13], 128
    $region69: #{tpu_custom_call.1} parent=1 // pred_fallthru
      _
    %796 = vsyncpa [#allocation3], 1
    %797 = vsyncpa [#allocation6], 1
    %798 = vsyncpa [#allocation9], 1
    %799 = vsyncpa [#allocation4], 1
    %800 = vsyncpa [#allocation13], 1

</llo_original>
